<compile_context>
chip_gen: v6e
topology: v6e:2x2x1
jax: 0.10.0
libtpu: 0.0.40
codegen_flags: <defaults>
</compile_context>

<pallas_src>
import functools

import jax
import jax.numpy as jnp
from jax.experimental import pallas as pl
from jax.experimental.pallas import tpu as pltpu


def _round_up(n, m):
    return ((n + m - 1) // m) * m


def residual_block_kernel(x_ref, w1_ref, b1_ref, w2_ref, b2_ref, o_ref, *, mxu_dtype):
    x = x_ref[...]                                             # [tm, D_pad] f32
    # fc1: [tm, D_pad] @ [D_pad, H_pad] + [1, H_pad]
    h = jnp.dot(x.astype(mxu_dtype), w1_ref[...],
                preferred_element_type=jnp.float32) + b1_ref[...]
    # LeakyReLU(negative_slope=0.01), elementwise in f32
    h = jnp.where(h > 0, h, 0.01 * h)
    # Dropout(p=0.5): eval/inference mode -> identity.
    # TODO(synk): training-mode dropout (random mask + 1/(1-p) scaling) would need
    # pltpu.prng_seed/prng_random_bits with an explicit seed.
    # fc2: [tm, H_pad] @ [H_pad, D_pad] + [1, D_pad]
    out = jnp.dot(h.astype(mxu_dtype), w2_ref[...],
                  preferred_element_type=jnp.float32) + b2_ref[...]
    # residual add
    o_ref[...] = (out + x).astype(o_ref.dtype)


def residual_block(x, w1, b1, w2, b2, *, use_bf16_mxu=False, tm_max=512):
    """x: [B, D_in]; w1: [H, D_in]; b1: [H]; w2: [D_in, H]; b2: [D_in]."""
    B, D_in = x.shape
    H = w1.shape[0]

    # Lane/sublane padding. Padded K columns/rows are zero, so results are exact.
    D_pad = _round_up(D_in, 128)            # lane-dense features (full 128-wide stores)
    H_pad = _round_up(H, 128)
    tm = min(tm_max, _round_up(B, 8))       # batch tile (sublane multiple of 8)
    B_pad = _round_up(B, tm)

    mxu_dtype = jnp.bfloat16 if use_bf16_mxu else x.dtype

    # Glue: pre-transpose weights to [in, out], lift biases to rows, zero-pad.
    x_pad = jnp.zeros((B_pad, D_pad), x.dtype).at[:B, :D_in].set(x)
    w1_t = jnp.zeros((D_pad, H_pad), mxu_dtype).at[:D_in, :H].set(
        jnp.asarray(w1).astype(mxu_dtype).T)
    w2_t = jnp.zeros((H_pad, D_pad), mxu_dtype).at[:H, :D_in].set(
        jnp.asarray(w2).astype(mxu_dtype).T)
    b1_2d = jnp.zeros((1, H_pad), x.dtype).at[0, :H].set(jnp.asarray(b1))
    b2_2d = jnp.zeros((1, D_pad), x.dtype).at[0, :D_in].set(jnp.asarray(b2))

    kernel = functools.partial(residual_block_kernel, mxu_dtype=mxu_dtype)

    out = pl.pallas_call(
        kernel,
        out_shape=jax.ShapeDtypeStruct((B_pad, D_pad), x.dtype),
        grid_spec=pl.GridSpec(
            grid=(B_pad // tm,),
            in_specs=[
                pl.BlockSpec((tm, D_pad), lambda i: (i, 0)),     # x: pipelined over batch
                pl.BlockSpec((D_pad, H_pad), lambda i: (0, 0)),  # w1: VMEM-resident
                pl.BlockSpec((1, H_pad), lambda i: (0, 0)),      # b1: VMEM-resident
                pl.BlockSpec((H_pad, D_pad), lambda i: (0, 0)),  # w2: VMEM-resident
                pl.BlockSpec((1, D_pad), lambda i: (0, 0)),      # b2: VMEM-resident
            ],
            out_specs=pl.BlockSpec((tm, D_pad), lambda i: (i, 0)),
        ),
        compiler_params=pltpu.CompilerParams(
            dimension_semantics=("parallel",)),  # batch axis -> both TCs on v7x
        input_output_aliases={0: 0},             # reuse padded-x HBM buffer for output
    )(x_pad, w1_t, b1_2d, w2_t, b2_2d)

    return out[:B, :D_in]


def _reference(x, w1, b1, w2, b2):
    h = x @ w1.T + b1
    h = jnp.where(h > 0, h, 0.01 * h)
    return h @ w2.T + b2 + x


if __name__ == "__main__":
    key = jax.random.PRNGKey(0)
    B, D_in, H = 8, 32, 64   # batch, input_size, hidden_size

    kx, k1, k2, k3, k4 = jax.random.split(key, 5)
    x = jax.random.normal(kx, (B, D_in), dtype=jnp.float32)

    # Deterministic PyTorch-Linear-style init: U(-1/sqrt(fan_in), 1/sqrt(fan_in))
    bound1 = 1.0 / (D_in ** 0.5)
    bound2 = 1.0 / (H ** 0.5)
    w1 = jax.random.uniform(k1, (H, D_in), minval=-bound1, maxval=bound1, dtype=jnp.float32)
    b1 = jax.random.uniform(k2, (H,),      minval=-bound1, maxval=bound1, dtype=jnp.float32)
    w2 = jax.random.uniform(k3, (D_in, H), minval=-bound2, maxval=bound2, dtype=jnp.float32)
    b2 = jax.random.uniform(k4, (D_in,),   minval=-bound2, maxval=bound2, dtype=jnp.float32)

    ref = _reference(x, w1, b1, w2, b2)

    # f32 MXU path: exact (padded K entries are zero), tight tolerance.
    out = jax.block_until_ready(residual_block(x, w1, b1, w2, b2))
    assert out.shape == (B, D_in)
    assert jnp.allclose(out, ref, atol=1e-5, rtol=1e-5), "f32 kernel mismatch vs reference"

    # Non-multiple batch size: exercises batch padding / tiling path.
    x13 = jax.random.normal(jax.random.PRNGKey(1), (13, D_in), dtype=jnp.float32)
    out13 = jax.block_until_ready(residual_block(x13, w1, b1, w2, b2))
    ref13 = _reference(x13, w1, b1, w2, b2)
    assert out13.shape == (13, D_in)
    assert jnp.allclose(out13, ref13, atol=1e-5, rtol=1e-5), "padded-batch kernel mismatch"

    # bf16 MXU-input path (f32 accumulation / elementwise): looser tolerance.
    out_bf16 = jax.block_until_ready(residual_block(x, w1, b1, w2, b2, use_bf16_mxu=True))
    assert jnp.allclose(out_bf16, ref, atol=1e-1, rtol=1e-1), "bf16 kernel mismatch vs reference"

    print("KERNEL_OK")
</pallas_src>

<mosaic_0001>
module attributes {stable_mosaic.version = 11 : i64} {
  func.func @residual_block_kernel(%arg0: i32, %arg1: memref<8x128xf32, #tpu.memory_space<vmem>>, %arg2: memref<128x128xf32, #tpu.memory_space<vmem>>, %arg3: memref<1x128xf32, #tpu.memory_space<vmem>>, %arg4: memref<128x128xf32, #tpu.memory_space<vmem>>, %arg5: memref<1x128xf32, #tpu.memory_space<vmem>>, %arg6: memref<8x128xf32, #tpu.memory_space<vmem>>) attributes {dimension_semantics = [#tpu.dimension_semantics<parallel>], iteration_bounds = array<i64: 1>, scalar_prefetch = 0 : i64, scratch_operands = 0 : i64, tpu.core_type = #tpu.core_type<tc>, window_params = [{transform_indices = @transform_0, window_bounds = array<i64: 8, 128>}, {pipeline_mode = #tpu.pipeline_mode<synchronous>, transform_indices = @transform_1, window_bounds = array<i64: 128, 128>}, {pipeline_mode = #tpu.pipeline_mode<synchronous>, transform_indices = @transform_2, window_bounds = array<i64: 1, 128>}, {pipeline_mode = #tpu.pipeline_mode<synchronous>, transform_indices = @transform_3, window_bounds = array<i64: 128, 128>}, {pipeline_mode = #tpu.pipeline_mode<synchronous>, transform_indices = @transform_4, window_bounds = array<i64: 1, 128>}, {transform_indices = @transform_5, window_bounds = array<i64: 8, 128>}]} {
    %c0 = arith.constant 0 : index
    %c0_0 = arith.constant 0 : index
    %0 = vector.load %arg1[%c0, %c0_0] : memref<8x128xf32, #tpu.memory_space<vmem>>, vector<8x128xf32>
    %c0_1 = arith.constant 0 : index
    %c0_2 = arith.constant 0 : index
    %1 = vector.load %arg2[%c0_1, %c0_2] : memref<128x128xf32, #tpu.memory_space<vmem>>, vector<128x128xf32>
    %cst = arith.constant dense<0.000000e+00> : vector<8x128xf32>
    %2 = tpu.matmul %0, %1, %cst {dimension_numbers = #tpu.dot_dimension_numbers<[1], [0], [0], [1], [0, 0, 1, 1], [], []>} : vector<8x128xf32>, vector<128x128xf32>, vector<8x128xf32> -> vector<8x128xf32>
    %c0_3 = arith.constant 0 : index
    %c0_4 = arith.constant 0 : index
    %3 = vector.load %arg3[%c0_3, %c0_4] : memref<1x128xf32, #tpu.memory_space<vmem>>, vector<1x128xf32>
    %4 = vector.broadcast %3 : vector<1x128xf32> to vector<8x128xf32>
    %5 = arith.addf %2, %4 : vector<8x128xf32>
    %cst_5 = arith.constant 0.000000e+00 : f32
    %6 = vector.broadcast %cst_5 : f32 to vector<8x128xf32>
    %7 = arith.cmpf ogt, %5, %6 : vector<8x128xf32>
    %cst_6 = arith.constant 0.00999999977 : f32
    %8 = vector.broadcast %cst_6 : f32 to vector<8x128xf32>
    %9 = arith.mulf %8, %5 : vector<8x128xf32>
    %10 = arith.select %7, %5, %9 : vector<8x128xi1>, vector<8x128xf32>
    %c0_7 = arith.constant 0 : index
    %c0_8 = arith.constant 0 : index
    %11 = vector.load %arg4[%c0_7, %c0_8] : memref<128x128xf32, #tpu.memory_space<vmem>>, vector<128x128xf32>
    %cst_9 = arith.constant dense<0.000000e+00> : vector<8x128xf32>
    %12 = tpu.matmul %10, %11, %cst_9 {dimension_numbers = #tpu.dot_dimension_numbers<[1], [0], [0], [1], [0, 0, 1, 1], [], []>} : vector<8x128xf32>, vector<128x128xf32>, vector<8x128xf32> -> vector<8x128xf32>
    %c0_10 = arith.constant 0 : index
    %c0_11 = arith.constant 0 : index
    %13 = vector.load %arg5[%c0_10, %c0_11] : memref<1x128xf32, #tpu.memory_space<vmem>>, vector<1x128xf32>
    %14 = vector.broadcast %13 : vector<1x128xf32> to vector<8x128xf32>
    %15 = arith.addf %12, %14 : vector<8x128xf32>
    %16 = arith.addf %15, %0 : vector<8x128xf32>
    %c0_12 = arith.constant 0 : index
    %c0_13 = arith.constant 0 : index
    %17 = vector.load %arg6[%c0_12, %c0_13] : memref<8x128xf32, #tpu.memory_space<vmem>>, vector<8x128xf32>
    tpu.vector_store %arg6[%c0_12, %c0_13], %16 {strides = array<i32>} : memref<8x128xf32, #tpu.memory_space<vmem>>, vector<8x128xf32>,
    return
  }
  func.func @transform_0(%arg0: i32) -> (i32, i32) {
    %c0_i32 = arith.constant 0 : i32
    %c0_i32_0 = arith.constant 0 : i32
    return %arg0, %c0_i32 : i32, i32
  }
  func.func @transform_1(%arg0: i32) -> (i32, i32) {
    %c0_i32 = arith.constant 0 : i32
    %c0_i32_0 = arith.constant 0 : i32
    %c0_i32_1 = arith.constant 0 : i32
    return %c0_i32, %c0_i32_0 : i32, i32
  }
  func.func @transform_2(%arg0: i32) -> (i32, i32) {
    %c0_i32 = arith.constant 0 : i32
    %c0_i32_0 = arith.constant 0 : i32
    %c0_i32_1 = arith.constant 0 : i32
    return %c0_i32, %c0_i32_0 : i32, i32
  }
  func.func @transform_3(%arg0: i32) -> (i32, i32) {
    %c0_i32 = arith.constant 0 : i32
    %c0_i32_0 = arith.constant 0 : i32
    %c0_i32_1 = arith.constant 0 : i32
    return %c0_i32, %c0_i32_0 : i32, i32
  }
  func.func @transform_4(%arg0: i32) -> (i32, i32) {
    %c0_i32 = arith.constant 0 : i32
    %c0_i32_0 = arith.constant 0 : i32
    %c0_i32_1 = arith.constant 0 : i32
    return %c0_i32, %c0_i32_0 : i32, i32
  }
  func.func @transform_5(%arg0: i32) -> (i32, i32) {
    %c0_i32 = arith.constant 0 : i32
    %c0_i32_0 = arith.constant 0 : i32
    return %arg0, %c0_i32 : i32, i32
  }
}

</mosaic_0001>

<llo_original>
// kernel: tpu_custom_call.1
$region0: #{tpu_custom_call.1}
  #allocation0 [shape = 'u32[]', space=smem, size = 0x4, offset = 0x4, fixed_abs, tag = 'smem constant byte address 0x4 - core index']
  #allocation1 [shape = 'u32[144,128]{1,0:T(1,128)}', space=vmem, size = 0x12000, scoped, tag = 'internal scratch']
  %s0 = inlined_call_operand.hbm [shape: f32[8,128], index: 0, kind: input, shape index: {}, may-alias: {0,5}]
  %s1 = inlined_call_operand.hbm [shape: f32[128,128], index: 1, kind: input, shape index: {}]
  %s2 = inlined_call_operand.vmem [shape: f32[1,128], index: 2, kind: input, shape index: {}]
  %s3 = inlined_call_operand.hbm [shape: f32[128,128], index: 3, kind: input, shape index: {}]
  %s4 = inlined_call_operand.vmem [shape: f32[1,128], index: 4, kind: input, shape index: {}]
  %s5 = inlined_call_operand.hbm [shape: f32[8,128], index: 5, kind: output, shape index: {}, may-alias: {0,5}]
  %s6 = sld [smem:[#allocation0]]
  $region42: #{tpu_custom_call.1} parent=0
    _
  %s8 = ssub.s32 1, %s6
  %s9 = scalar_select 0, %s8, %s6
  $region1: #{tpu_custom_call.1} parent=0
    #allocation2 [shape = 'u8[4096]{0}', space=vmem, size = 0x1000, scoped, tag = 'input window, operand 0, single buffered']
    #allocation3 [shape = 's32[1]{0}', space=sflag, size = 0x4, scoped, tag = 'scoped memory for tpu_custom_call.1']
    #allocation4 [shape = 's32[1]{0}', space=sflag, size = 0x4, scoped, tag = 'scoped memory for tpu_custom_call.1']
    #allocation5 [shape = 'u8[65536]{0}', space=vmem, size = 0x10000, scoped, tag = 'input window, operand 1, single buffered']
    #allocation6 [shape = 's32[1]{0}', space=sflag, size = 0x4, scoped, tag = 'scoped memory for tpu_custom_call.1']
    #allocation7 [shape = 'u8[65536]{0}', space=vmem, size = 0x10000, scoped, tag = 'input window, operand 3, single buffered']
    #allocation8 [shape = 'u8[4096]{0}', space=vmem, size = 0x1000, scoped, tag = 'output window, operand 0, single buffered']
    %10 = vsyncpa [#allocation3], 0
    %11 = vsyncpa [#allocation6], 0
    %12 = vsyncpa [#allocation4], 0
    // Predicated region
    $region2: #{tpu_custom_call.1} parent=1 // pred_check
      _
    $region3: #{tpu_custom_call.1} parent=1 // pred_check_branch
      %14 = sbr.rel (0) target = $region5
    $region4: #{tpu_custom_call.1} parent=1 // pred_region
      %s16 = ssub.s32 128, 128
      %17 = vsyncadd [#allocation3], %s16
      %s19 = sshll.u32 [#allocation2], 4
      %s20 = int_to_ptr.vmem [resolvable:$true] %s19
      %22 = dma.hbm_to_vmem [thread:$0]  %s0, 128, %s20, [#allocation3]
    $region5: #{tpu_custom_call.1} parent=1 // pred_fallthru
      _
    // Predicated region
    $region6: #{tpu_custom_call.1} parent=1 // pred_check
      _
    $region7: #{tpu_custom_call.1} parent=1 // pred_check_branch
      %24 = sbr.rel (0) target = $region9
    $region8: #{tpu_custom_call.1} parent=1 // pred_region
      %s26 = ssub.s32 2048, 2048
      %27 = vsyncadd [#allocation6], %s26
      %s28 = sshll.u32 [#allocation5], 4
      %s29 = int_to_ptr.vmem [resolvable:$true] %s28
      %34 = dma.hbm_to_vmem [thread:$0]  %s1, 2048, %s29, [#allocation6], 128, 128, 8
    $region9: #{tpu_custom_call.1} parent=1 // pred_fallthru
      _
    // Predicated region
    $region10: #{tpu_custom_call.1} parent=1 // pred_check
      _
    $region11: #{tpu_custom_call.1} parent=1 // pred_check_branch
      %36 = sbr.rel (0) target = $region13
    $region12: #{tpu_custom_call.1} parent=1 // pred_region
      _
    $region13: #{tpu_custom_call.1} parent=1 // pred_fallthru
      _
    // Predicated region
    $region14: #{tpu_custom_call.1} parent=1 // pred_check
      _
    $region15: #{tpu_custom_call.1} parent=1 // pred_check_branch
      %38 = sbr.rel (0) target = $region17
    $region16: #{tpu_custom_call.1} parent=1 // pred_region
      %s40 = ssub.s32 2048, 2048
      %41 = vsyncadd [#allocation6], %s40
      %s42 = sshll.u32 [#allocation7], 4
      %s43 = int_to_ptr.vmem [resolvable:$true] %s42
      %48 = dma.hbm_to_vmem [thread:$0]  %s3, 2048, %s43, [#allocation6], 128, 128, 8
    $region17: #{tpu_custom_call.1} parent=1 // pred_fallthru
      _
    // Predicated region
    $region18: #{tpu_custom_call.1} parent=1 // pred_check
      _
    $region19: #{tpu_custom_call.1} parent=1 // pred_check_branch
      %50 = sbr.rel (0) target = $region21
    $region20: #{tpu_custom_call.1} parent=1 // pred_region
      _
    $region21: #{tpu_custom_call.1} parent=1 // pred_fallthru
      _
    // Predicated region
    $region22: #{tpu_custom_call.1} parent=1 // pred_check
      _
    $region23: #{tpu_custom_call.1} parent=1 // pred_check_branch
      %52 = sbr.rel (0) target = $region25
    $region24: #{tpu_custom_call.1} parent=1 // pred_region
      %53 = dma.done [#allocation3], 128
    $region25: #{tpu_custom_call.1} parent=1 // pred_fallthru
      _
    // Predicated region
    $region26: #{tpu_custom_call.1} parent=1 // pred_check
      _
    $region27: #{tpu_custom_call.1} parent=1 // pred_check_branch
      %55 = sbr.rel (0) target = $region29
    $region28: #{tpu_custom_call.1} parent=1 // pred_region
      %56 = dma.done [#allocation6], 2048
    $region29: #{tpu_custom_call.1} parent=1 // pred_fallthru
      _
    // Predicated region
    $region30: #{tpu_custom_call.1} parent=1 // pred_check
      _
    $region31: #{tpu_custom_call.1} parent=1 // pred_check_branch
      %58 = sbr.rel (0) target = $region33
    $region32: #{tpu_custom_call.1} parent=1 // pred_region
      %59 = dma.done [#allocation6], 2048
    $region33: #{tpu_custom_call.1} parent=1 // pred_fallthru
      _
    %v60 = vld [vmem:[#allocation2] sm:$0xff]
    %v61 = vld [vmem:[#allocation5] sm:$0xff]
    %v62 = vld [vmem:[#allocation5 + $0x8] sm:$0xff]
    %v63 = vld [vmem:[#allocation5 + $0x10] sm:$0xff]
    %v64 = vld [vmem:[#allocation5 + $0x18] sm:$0xff]
    %v65 = vld [vmem:[#allocation5 + $0x20] sm:$0xff]
    %v66 = vld [vmem:[#allocation5 + $0x28] sm:$0xff]
    %v67 = vld [vmem:[#allocation5 + $0x30] sm:$0xff]
    %v68 = vld [vmem:[#allocation5 + $0x38] sm:$0xff]
    %v69 = vld [vmem:[#allocation5 + $0x40] sm:$0xff]
    %v70 = vld [vmem:[#allocation5 + $0x48] sm:$0xff]
    %v71 = vld [vmem:[#allocation5 + $0x50] sm:$0xff]
    %v72 = vld [vmem:[#allocation5 + $0x58] sm:$0xff]
    %v73 = vld [vmem:[#allocation5 + $0x60] sm:$0xff]
    %v74 = vld [vmem:[#allocation5 + $0x68] sm:$0xff]
    %v75 = vld [vmem:[#allocation5 + $0x70] sm:$0xff]
    %v76 = vld [vmem:[#allocation5 + $0x78] sm:$0xff]
    %v77 = vld [vmem:[%s2] sm:$0x1]
    %v79 = vlaneseq
    %v80 = vshrl.u32 %v79, 7
    %v81 = vsub.s32 0, %v80
    %v82 = vrot.slane %v77, %v81
    %84 = vmatprep.subr.mxu0 0.0
    %85 = vmatpush1.msra.mxu0 %v76
    %86 = vmatprep.subr.mxu0 0.0
    %87 = vmatpush1.msra.mxu0 %v75
    %88 = vmatprep.subr.mxu0 0.0
    %89 = vmatpush1.msra.mxu0 %v74
    %90 = vmatprep.subr.mxu0 0.0
    %91 = vmatpush1.msra.mxu0 %v73
    %92 = vmatprep.subr.mxu0 0.0
    %93 = vmatpush1.msra.mxu0 %v72
    %94 = vmatprep.subr.mxu0 0.0
    %95 = vmatpush1.msra.mxu0 %v71
    %96 = vmatprep.subr.mxu0 0.0
    %97 = vmatpush1.msra.mxu0 %v70
    %98 = vmatprep.subr.mxu0 0.0
    %99 = vmatpush1.msra.mxu0 %v69
    %100 = vmatprep.subr.mxu0 0.0
    %101 = vmatpush1.msra.mxu0 %v68
    %102 = vmatprep.subr.mxu0 0.0
    %103 = vmatpush1.msra.mxu0 %v67
    %104 = vmatprep.subr.mxu0 0.0
    %105 = vmatpush1.msra.mxu0 %v66
    %106 = vmatprep.subr.mxu0 0.0
    %107 = vmatpush1.msra.mxu0 %v65
    %108 = vmatprep.subr.mxu0 0.0
    %109 = vmatpush1.msra.mxu0 %v64
    %110 = vmatprep.subr.mxu0 0.0
    %111 = vmatpush1.msra.mxu0 %v63
    %112 = vmatprep.subr.mxu0 0.0
    %113 = vmatpush1.msra.mxu0 %v62
    %114 = vmatprep.subr.mxu0 0.0
    %115 = vmatpush1.msra.mxu0 %v61
    %116 = vmatprep.subr.mxu0 0.0
    %117 = vmatpush2.msra.mxu0 0.0
    %118 = vmatprep.subr.mxu0 0.0
    %119 = vmatpush2.msra.mxu0 0.0
    %120 = vmatprep.subr.mxu0 0.0
    %121 = vmatpush2.msra.mxu0 0.0
    %122 = vmatprep.subr.mxu0 0.0
    %123 = vmatpush2.msra.mxu0 0.0
    %124 = vmatprep.subr.mxu0 0.0
    %125 = vmatpush2.msra.mxu0 0.0
    %126 = vmatprep.subr.mxu0 0.0
    %127 = vmatpush2.msra.mxu0 0.0
    %128 = vmatprep.subr.mxu0 0.0
    %129 = vmatpush2.msra.mxu0 0.0
    %130 = vmatprep.subr.mxu0 0.0
    %131 = vmatpush2.msra.mxu0 0.0
    %132 = vmatprep.subr.mxu0 0.0
    %133 = vmatpush2.msra.mxu0 0.0
    %134 = vmatprep.subr.mxu0 0.0
    %135 = vmatpush2.msra.mxu0 0.0
    %136 = vmatprep.subr.mxu0 0.0
    %137 = vmatpush2.msra.mxu0 0.0
    %138 = vmatprep.subr.mxu0 0.0
    %139 = vmatpush2.msra.mxu0 0.0
    %140 = vmatprep.subr.mxu0 0.0
    %141 = vmatpush2.msra.mxu0 0.0
    %142 = vmatprep.subr.mxu0 0.0
    %143 = vmatpush2.msra.mxu0 0.0
    %144 = vmatprep.subr.mxu0 0.0
    %145 = vmatpush2.msra.mxu0 0.0
    %146 = vmatprep.subr.mxu0 0.0
    %147 = vmatpush2.msra.mxu0 0.0
    %148 = vmatprep.mubr.f32.mxu0 0.0
    %149 = vmatmul.mubr.f32.gmra.mxu0 %v60
    %v150 = vpop.f32.mrf.mxu0
    %v151 = vadd.f32 %v82, %v150
    %v152 = vpop.f32.mrf.mxu0
    %153 = vdwg.mxu0
    %vm154 = vcmp.gt.f32.partialorder %v151, 0.0
    %v155 = vmul.f32 %v151, 0.01
    %v156 = vsel %vm154, %v151, %v155
    %v157 = vld [vmem:[#allocation7] sm:$0xff]
    %v158 = vld [vmem:[#allocation7 + $0x8] sm:$0xff]
    %v159 = vld [vmem:[#allocation7 + $0x10] sm:$0xff]
    %v160 = vld [vmem:[#allocation7 + $0x18] sm:$0xff]
    %v161 = vld [vmem:[#allocation7 + $0x20] sm:$0xff]
    %v162 = vld [vmem:[#allocation7 + $0x28] sm:$0xff]
    %v163 = vld [vmem:[#allocation7 + $0x30] sm:$0xff]
    %v164 = vld [vmem:[#allocation7 + $0x38] sm:$0xff]
    %v165 = vld [vmem:[#allocation7 + $0x40] sm:$0xff]
    %v166 = vld [vmem:[#allocation7 + $0x48] sm:$0xff]
    %v167 = vld [vmem:[#allocation7 + $0x50] sm:$0xff]
    %v168 = vld [vmem:[#allocation7 + $0x58] sm:$0xff]
    %v169 = vld [vmem:[#allocation7 + $0x60] sm:$0xff]
    %v170 = vld [vmem:[#allocation7 + $0x68] sm:$0xff]
    %v171 = vld [vmem:[#allocation7 + $0x70] sm:$0xff]
    %v172 = vld [vmem:[#allocation7 + $0x78] sm:$0xff]
    %v173 = vld [vmem:[%s4] sm:$0x1]
    %v175 = vlaneseq
    %v176 = vshrl.u32 %v175, 7
    %v177 = vsub.s32 0, %v176
    %v178 = vrot.slane %v173, %v177
    %180 = vmatprep.subr.mxu0 0.0
    %181 = vmatpush1.msra.mxu0 %v172
    %182 = vmatprep.subr.mxu0 0.0
    %183 = vmatpush1.msra.mxu0 %v171
    %184 = vmatprep.subr.mxu0 0.0
    %185 = vmatpush1.msra.mxu0 %v170
    %186 = vmatprep.subr.mxu0 0.0
    %187 = vmatpush1.msra.mxu0 %v169
    %188 = vmatprep.subr.mxu0 0.0
    %189 = vmatpush1.msra.mxu0 %v168
    %190 = vmatprep.subr.mxu0 0.0
    %191 = vmatpush1.msra.mxu0 %v167
    %192 = vmatprep.subr.mxu0 0.0
    %193 = vmatpush1.msra.mxu0 %v166
    %194 = vmatprep.subr.mxu0 0.0
    %195 = vmatpush1.msra.mxu0 %v165
    %196 = vmatprep.subr.mxu0 0.0
    %197 = vmatpush1.msra.mxu0 %v164
    %198 = vmatprep.subr.mxu0 0.0
    %199 = vmatpush1.msra.mxu0 %v163
    %200 = vmatprep.subr.mxu0 0.0
    %201 = vmatpush1.msra.mxu0 %v162
    %202 = vmatprep.subr.mxu0 0.0
    %203 = vmatpush1.msra.mxu0 %v161
    %204 = vmatprep.subr.mxu0 0.0
    %205 = vmatpush1.msra.mxu0 %v160
    %206 = vmatprep.subr.mxu0 0.0
    %207 = vmatpush1.msra.mxu0 %v159
    %208 = vmatprep.subr.mxu0 0.0
    %209 = vmatpush1.msra.mxu0 %v158
    %210 = vmatprep.subr.mxu0 0.0
    %211 = vmatpush1.msra.mxu0 %v157
    %212 = vmatprep.subr.mxu0 0.0
    %213 = vmatpush2.msra.mxu0 0.0
    %214 = vmatprep.subr.mxu0 0.0
    %215 = vmatpush2.msra.mxu0 0.0
    %216 = vmatprep.subr.mxu0 0.0
    %217 = vmatpush2.msra.mxu0 0.0
    %218 = vmatprep.subr.mxu0 0.0
    %219 = vmatpush2.msra.mxu0 0.0
    %220 = vmatprep.subr.mxu0 0.0
    %221 = vmatpush2.msra.mxu0 0.0
    %222 = vmatprep.subr.mxu0 0.0
    %223 = vmatpush2.msra.mxu0 0.0
    %224 = vmatprep.subr.mxu0 0.0
    %225 = vmatpush2.msra.mxu0 0.0
    %226 = vmatprep.subr.mxu0 0.0
    %227 = vmatpush2.msra.mxu0 0.0
    %228 = vmatprep.subr.mxu0 0.0
    %229 = vmatpush2.msra.mxu0 0.0
    %230 = vmatprep.subr.mxu0 0.0
    %231 = vmatpush2.msra.mxu0 0.0
    %232 = vmatprep.subr.mxu0 0.0
    %233 = vmatpush2.msra.mxu0 0.0
    %234 = vmatprep.subr.mxu0 0.0
    %235 = vmatpush2.msra.mxu0 0.0
    %236 = vmatprep.subr.mxu0 0.0
    %237 = vmatpush2.msra.mxu0 0.0
    %238 = vmatprep.subr.mxu0 0.0
    %239 = vmatpush2.msra.mxu0 0.0
    %240 = vmatprep.subr.mxu0 0.0
    %241 = vmatpush2.msra.mxu0 0.0
    %242 = vmatprep.subr.mxu0 0.0
    %243 = vmatpush2.msra.mxu0 0.0
    %244 = vmatprep.mubr.f32.mxu0 0.0
    %245 = vmatmul.mubr.f32.gmra.mxu0 %v156
    %v246 = vpop.f32.mrf.mxu0
    %v247 = vadd.f32 %v178, %v246
    %v248 = vpop.f32.mrf.mxu0
    %249 = vdwg.mxu0
    %v250 = vadd.f32 %v247, %v60
    %251 = vst [vmem:[#allocation8] sm:$0xff] %v250
    // Predicated region
    $region34: #{tpu_custom_call.1} parent=1 // pred_check
      _
    $region35: #{tpu_custom_call.1} parent=1 // pred_check_branch
      %253 = sbr.rel (0) target = $region37
    $region36: #{tpu_custom_call.1} parent=1 // pred_region
      %s255 = ssub.s32 128, 128
      %256 = vsyncadd [#allocation4], %s255
      %s258 = sshll.u32 [#allocation8], 4
      %s259 = int_to_ptr.vmem [resolvable:$true] %s258
      %261 = dma.vmem_to_hbm [thread:$0]  %s259, 128, %s5, [#allocation4]
    $region37: #{tpu_custom_call.1} parent=1 // pred_fallthru
      _
    // Predicated region
    $region38: #{tpu_custom_call.1} parent=1 // pred_check
      _
    $region39: #{tpu_custom_call.1} parent=1 // pred_check_branch
      %263 = sbr.rel (0) target = $region41
    $region40: #{tpu_custom_call.1} parent=1 // pred_region
      %264 = dma.done [#allocation4], 128
    $region41: #{tpu_custom_call.1} parent=1 // pred_fallthru
      _
    %265 = vsyncpa [#allocation3], 1
    %266 = vsyncpa [#allocation6], 1
    %267 = vsyncpa [#allocation4], 1

</llo_original>
